<compile_context>
chip_gen: v7x
topology: tpu7x:2x2x1
jax: 0.10.0
libtpu: 0.0.40
codegen_flags: <defaults>
</compile_context>

<pallas_src>
import functools

import jax
import jax.numpy as jnp
from jax.experimental import pallas as pl
from jax.experimental.pallas import tpu as pltpu


def _round_up(x, m):
    return (x + m - 1) // m * m


def _vmem_capacity_bytes():
    """Physical VMEM per TensorCore; conservative fallback if the query fails."""
    try:
        return int(pltpu.get_tpu_info().vmem_capacity_bytes)
    except Exception:
        return 64 * 1024 * 1024          # v7x per-TC size = safest assumption


def _choose_tm(B):
    """Batch tile: as large as is useful, but keep >= 2 grid steps for big B."""
    if B >= 512:
        # >= 2 tiles of >= 256 rows: fills the 256-row MXU M dim (v6e/v7x) and
        # keeps both v7x TensorCores busy via dimension_semantics=("parallel",).
        return min(512, _round_up((B + 1) // 2, 8))
    return _round_up(max(B, 1), 8)       # a single tile covers the whole batch


# ---------------------------------------------------------------------------
# Kernel
# ---------------------------------------------------------------------------
def critic_kernel(x_ref, w1_ref, w234_ref, vecs_ref, q_ref):
    cdt = w1_ref.dtype            # MXU compute dtype (f32 exact / bf16 fast)
    f32 = jnp.float32

    # fc1 + relu: one lane-aligned matmul (concat + pad done in the wrapper).
    h = jnp.dot(x_ref[...], w1_ref[...], preferred_element_type=f32)
    h = jnp.maximum(h + vecs_ref[0:1, :], 0.0)

    # fc2..fc4 + relu; stacked weights stay VMEM-resident across grid steps.
    for layer in range(3):        # static unroll
        h = jnp.dot(h.astype(cdt), w234_ref[layer], preferred_element_type=f32)
        h = jnp.maximum(h + vecs_ref[layer + 1:layer + 2, :], 0.0)

    # q head: N=1 matmul replaced by a VPU multiply + XLU lane reduction (f32).
    wq_row = vecs_ref[4:5, :]     # (1, H)
    bq = vecs_ref[5:6, 0:1]       # (1, 1)
    q_ref[...] = jnp.sum(h * wq_row, axis=-1, keepdims=True) + bq
    # TODO(synk): lane-dense (1, TM) output layout (XLU transpose of q) is a
    # possible small store win at long grids; measure before committing.


# ---------------------------------------------------------------------------
# pallas_call wrapper
# ---------------------------------------------------------------------------
@functools.partial(jax.jit, static_argnames=("single_buffer",))
def _critic_forward_impl(state, action, w1, w234, vecs, *, single_buffer):
    B, S = state.shape
    A = action.shape[1]
    Kp, H = w1.shape                          # lane-aligned K, padded hidden
    cdt = w1.dtype                            # MXU compute dtype

    # torch `.float()` semantics, then ONE wrapper-side cast to the compute
    # dtype (bf16 fast path: halves activation DMA bytes, no per-tile casts).
    x = jnp.concatenate([state, action], axis=1).astype(jnp.float32).astype(cdt)

    TM = _choose_tm(B)
    B_pad = _round_up(B, TM)
    x = jnp.pad(x, ((0, B_pad - B), (0, Kp - (S + A))))   # batch + lane pad
    grid = (B_pad // TM,)

    # --- VMEM budget (per TensorCore; weights replicate into each TC) -------
    n_wbuf = 1 if single_buffer else 2
    vmem_bytes = (
        2 * TM * Kp * x.dtype.itemsize               # double-buffered x tiles
        + 2 * TM * 128 * 4                           # out tiles (lane-padded)
        + n_wbuf * (Kp * H + 3 * H * H) * w234.dtype.itemsize
        + n_wbuf * 8 * H * 4                         # bias / q-head pack
        + 2 * TM * H * 4                             # live f32 intermediates
    )
    cap = _vmem_capacity_bytes()
    assert vmem_bytes < cap - 16 * 1024 * 1024, (
        f"VMEM budget exceeded ({vmem_bytes} B of {cap} B); "
        "reduce TM or tile the weight K/N dims.")
    # Scoped limit: generous, but always leave >= 8 MiB compiler headroom.
    # v5e/v6e (128 MiB) may rise above 64 MiB; v7x lands at ~56 MiB.
    vmem_limit = int(min(max(2 * vmem_bytes, 32 * 1024 * 1024),
                         cap - 8 * 1024 * 1024))

    # Single-buffer the resident (constant-index) weight blocks when allowed.
    resident = {"pipeline_mode": pl.Buffered(1)} if single_buffer else {}
    in_specs = [
        pl.BlockSpec((TM, Kp), lambda i: (i, 0)),                  # x, pipelined
        pl.BlockSpec((Kp, H), lambda i: (0, 0), **resident),       # w1, resident
        pl.BlockSpec((3, H, H), lambda i: (0, 0, 0), **resident),  # w2..w4
        pl.BlockSpec((8, H), lambda i: (0, 0), **resident),        # b1..b4,wq,bq
    ]
    out_specs = pl.BlockSpec((TM, 1), lambda i: (i, 0))

    q_pad = pl.pallas_call(
        critic_kernel,
        out_shape=jax.ShapeDtypeStruct((B_pad, 1), jnp.float32),
        grid=grid,
        in_specs=in_specs,
        out_specs=out_specs,
        compiler_params=pltpu.CompilerParams(
            dimension_semantics=("parallel",),   # batch axis -> 2 TCs on v7x
            vmem_limit_bytes=vmem_limit),
    )(x, w1, w234, vecs)
    return q_pad[:B]


_SINGLE_BUFFER_OK = True


def critic_forward(state, action, packed):
    """state: (B, input_dims), action: (B, n_actions) -> q: (B, 1)."""
    global _SINGLE_BUFFER_OK
    args = (state, action, packed["w1"], packed["w234"], packed["vecs"])
    if _SINGLE_BUFFER_OK:
        try:
            return _critic_forward_impl(*args, single_buffer=True)
        except Exception:
            # This jax/Mosaic build rejected pl.Buffered(1); fall back to the
            # default double-buffered resident weights (identical semantics).
            _SINGLE_BUFFER_OK = False
    return _critic_forward_impl(*args, single_buffer=False)


# ---------------------------------------------------------------------------
# Parameter construction / packing
# ---------------------------------------------------------------------------
def init_params(key, input_dims, n_actions, fc1, fc2, fc3, fc4):
    """PyTorch nn.Linear-style init; weights stored (in, out) so y = x @ W + b."""
    def linear(k, fan_in, fan_out):
        kw, kb = jax.random.split(k)
        bound = 1.0 / (fan_in ** 0.5)
        w = jax.random.uniform(kw, (fan_in, fan_out), jnp.float32, -bound, bound)
        b = jax.random.uniform(kb, (fan_out,), jnp.float32, -bound, bound)
        return w, b

    keys = jax.random.split(key, 5)
    d_in = input_dims + n_actions
    w1, b1 = linear(keys[0], d_in, fc1)
    w2, b2 = linear(keys[1], fc1, fc2)
    w3, b3 = linear(keys[2], fc2, fc3)
    w4, b4 = linear(keys[3], fc3, fc4)
    wq, bq = linear(keys[4], fc4, 1)
    return dict(w1=w1, b1=b1, w2=w2, b2=b2, w3=w3, b3=b3,
                w4=w4, b4=b4, wq=wq, bq=bq)


def pack_params(params, compute_dtype=jnp.float32):
    """Pack/zero-pad params into 3 lane-aligned buffers for the kernel.

    Zero padding is semantically neutral: padded K rows multiply padded-zero
    input lanes, and padded H columns stay exactly zero through every ReLU
    layer and contribute nothing to the q head.
    """
    w1, w2, w3, w4 = params["w1"], params["w2"], params["w3"], params["w4"]
    b1, b2, b3, b4 = params["b1"], params["b2"], params["b3"], params["b4"]
    wq, bq = params["wq"], params["bq"]
    d_in = w1.shape[0]
    fc1, fc2, fc3, fc4 = w1.shape[1], w2.shape[1], w3.shape[1], w4.shape[1]
    Kp = _round_up(d_in, 128)                        # lane-aligned fc1 K
    H = _round_up(max(fc1, fc2, fc3, fc4), 128)      # rounded UP, never down

    def pad2(w, rows, cols):
        return jnp.pad(w, ((0, rows - w.shape[0]), (0, cols - w.shape[1])))

    w1p = pad2(w1, Kp, H).astype(compute_dtype)
    w234 = jnp.stack([pad2(w2, H, H), pad2(w3, H, H),
                      pad2(w4, H, H)]).astype(compute_dtype)

    vecs = jnp.zeros((8, H), jnp.float32)            # biases / q head in f32
    vecs = vecs.at[0, :fc1].set(b1)
    vecs = vecs.at[1, :fc2].set(b2)
    vecs = vecs.at[2, :fc3].set(b3)
    vecs = vecs.at[3, :fc4].set(b4)
    vecs = vecs.at[4, :fc4].set(wq.reshape(-1))
    vecs = vecs.at[5, 0].set(bq[0])
    return {"w1": w1p, "w234": w234, "vecs": vecs}


# ---------------------------------------------------------------------------
# Pure-JAX reference (module semantics, f32)
# ---------------------------------------------------------------------------
def reference_forward(state, action, p):
    x = jnp.concatenate([state, action], axis=1).astype(jnp.float32)
    h = jnp.maximum(x @ p["w1"] + p["b1"], 0.0)
    h = jnp.maximum(h @ p["w2"] + p["b2"], 0.0)
    h = jnp.maximum(h @ p["w3"] + p["b3"], 0.0)
    h = jnp.maximum(h @ p["w4"] + p["b4"], 0.0)
    return h @ p["wq"] + p["bq"]


if __name__ == "__main__":
    # Small shapes consistent with the module's forward.
    B = 2
    input_dims = 16
    n_actions = 4
    fc1_dims = fc2_dims = fc3_dims = fc4_dims = 32
    # fc5_dims / fc6_dims are unused by forward(), so no params are created.

    key = jax.random.PRNGKey(0)
    k_state, k_action, k_params = jax.random.split(key, 3)

    state = jax.random.normal(k_state, (B, input_dims), jnp.float32)
    action = jax.random.normal(k_action, (B, n_actions), jnp.float32)
    params = init_params(k_params, input_dims, n_actions,
                         fc1_dims, fc2_dims, fc3_dims, fc4_dims)

    q_ref = reference_forward(state, action, params)

    # Exact-semantics path (f32 weights / activations).
    packed_f32 = pack_params(params, jnp.float32)
    q_f32 = jax.block_until_ready(critic_forward(state, action, packed_f32))
    assert q_f32.shape == (B, 1), q_f32.shape
    assert jnp.allclose(q_f32, q_ref, atol=5e-3, rtol=5e-3), (q_f32, q_ref)

    # Fast path for v6e/v7x: bf16 weights + activations into the MXU,
    # f32 accumulation, f32 bias/ReLU and q head.
    packed_bf16 = pack_params(params, jnp.bfloat16)
    q_bf16 = jax.block_until_ready(critic_forward(state, action, packed_bf16))
    assert q_bf16.shape == (B, 1), q_bf16.shape
    assert jnp.allclose(q_bf16, q_ref, atol=1e-1, rtol=5e-2), (q_bf16, q_ref)

    print("KERNEL_OK")
</pallas_src>

<mosaic_0001>
module attributes {stable_mosaic.version = 11 : i64} {
  func.func @critic_kernel(%arg0: i32, %arg1: memref<8x128xf32, #tpu.memory_space<vmem>>, %arg2: memref<128x128xf32, #tpu.memory_space<vmem>>, %arg3: memref<3x128x128xf32, #tpu.memory_space<vmem>>, %arg4: memref<8x128xf32, #tpu.memory_space<vmem>>, %arg5: memref<8x1xf32, #tpu.memory_space<vmem>>) attributes {dimension_semantics = [#tpu.dimension_semantics<parallel>], iteration_bounds = array<i64: 1>, scalar_prefetch = 0 : i64, scratch_operands = 0 : i64, tpu.core_type = #tpu.core_type<tc>, window_params = [{transform_indices = @transform_0, window_bounds = array<i64: 8, 128>}, {pipeline_mode = #tpu.pipeline_mode<synchronous>, transform_indices = @transform_1, window_bounds = array<i64: 128, 128>}, {pipeline_mode = #tpu.pipeline_mode<synchronous>, transform_indices = @transform_2, window_bounds = array<i64: 3, 128, 128>}, {pipeline_mode = #tpu.pipeline_mode<synchronous>, transform_indices = @transform_3, window_bounds = array<i64: 8, 128>}, {transform_indices = @transform_4, window_bounds = array<i64: 8, 1>}]} {
    %c0 = arith.constant 0 : index
    %c0_0 = arith.constant 0 : index
    %0 = vector.load %arg1[%c0, %c0_0] : memref<8x128xf32, #tpu.memory_space<vmem>>, vector<8x128xf32>
    %c0_1 = arith.constant 0 : index
    %c0_2 = arith.constant 0 : index
    %1 = vector.load %arg2[%c0_1, %c0_2] : memref<128x128xf32, #tpu.memory_space<vmem>>, vector<128x128xf32>
    %cst = arith.constant dense<0.000000e+00> : vector<8x128xf32>
    %2 = tpu.matmul %0, %1, %cst {dimension_numbers = #tpu.dot_dimension_numbers<[1], [0], [0], [1], [0, 0, 1, 1], [], []>} : vector<8x128xf32>, vector<128x128xf32>, vector<8x128xf32> -> vector<8x128xf32>
    %c0_3 = arith.constant 0 : index
    %c0_4 = arith.constant 0 : index
    %3 = vector.load %arg4[%c0_3, %c0_4] : memref<8x128xf32, #tpu.memory_space<vmem>>, vector<1x128xf32>
    %4 = vector.broadcast %3 : vector<1x128xf32> to vector<8x128xf32>
    %5 = arith.addf %2, %4 : vector<8x128xf32>
    %cst_5 = arith.constant 0.000000e+00 : f32
    %6 = vector.broadcast %cst_5 : f32 to vector<8x128xf32>
    %7 = arith.maximumf %5, %6 : vector<8x128xf32>
    %c0_6 = arith.constant 0 : index
    %c0_7 = arith.constant 0 : index
    %c0_8 = arith.constant 0 : index
    %8 = vector.load %arg3[%c0_6, %c0_7, %c0_8] : memref<3x128x128xf32, #tpu.memory_space<vmem>>, vector<1x128x128xf32>
    %9 = vector.shape_cast %8 : vector<1x128x128xf32> to vector<128x128xf32>
    %cst_9 = arith.constant dense<0.000000e+00> : vector<8x128xf32>
    %10 = tpu.matmul %7, %9, %cst_9 {dimension_numbers = #tpu.dot_dimension_numbers<[1], [0], [0], [1], [0, 0, 1, 1], [], []>} : vector<8x128xf32>, vector<128x128xf32>, vector<8x128xf32> -> vector<8x128xf32>
    %c1 = arith.constant 1 : index
    %c0_10 = arith.constant 0 : index
    %11 = vector.load %arg4[%c1, %c0_10] : memref<8x128xf32, #tpu.memory_space<vmem>>, vector<1x128xf32>
    %12 = vector.broadcast %11 : vector<1x128xf32> to vector<8x128xf32>
    %13 = arith.addf %10, %12 : vector<8x128xf32>
    %cst_11 = arith.constant 0.000000e+00 : f32
    %14 = vector.broadcast %cst_11 : f32 to vector<8x128xf32>
    %15 = arith.maximumf %13, %14 : vector<8x128xf32>
    %c1_12 = arith.constant 1 : index
    %c0_13 = arith.constant 0 : index
    %c0_14 = arith.constant 0 : index
    %16 = vector.load %arg3[%c1_12, %c0_13, %c0_14] : memref<3x128x128xf32, #tpu.memory_space<vmem>>, vector<1x128x128xf32>
    %17 = vector.shape_cast %16 : vector<1x128x128xf32> to vector<128x128xf32>
    %cst_15 = arith.constant dense<0.000000e+00> : vector<8x128xf32>
    %18 = tpu.matmul %15, %17, %cst_15 {dimension_numbers = #tpu.dot_dimension_numbers<[1], [0], [0], [1], [0, 0, 1, 1], [], []>} : vector<8x128xf32>, vector<128x128xf32>, vector<8x128xf32> -> vector<8x128xf32>
    %c2 = arith.constant 2 : index
    %c0_16 = arith.constant 0 : index
    %19 = vector.load %arg4[%c2, %c0_16] : memref<8x128xf32, #tpu.memory_space<vmem>>, vector<1x128xf32>
    %20 = vector.broadcast %19 : vector<1x128xf32> to vector<8x128xf32>
    %21 = arith.addf %18, %20 : vector<8x128xf32>
    %cst_17 = arith.constant 0.000000e+00 : f32
    %22 = vector.broadcast %cst_17 : f32 to vector<8x128xf32>
    %23 = arith.maximumf %21, %22 : vector<8x128xf32>
    %c2_18 = arith.constant 2 : index
    %c0_19 = arith.constant 0 : index
    %c0_20 = arith.constant 0 : index
    %24 = vector.load %arg3[%c2_18, %c0_19, %c0_20] : memref<3x128x128xf32, #tpu.memory_space<vmem>>, vector<1x128x128xf32>
    %25 = vector.shape_cast %24 : vector<1x128x128xf32> to vector<128x128xf32>
    %cst_21 = arith.constant dense<0.000000e+00> : vector<8x128xf32>
    %26 = tpu.matmul %23, %25, %cst_21 {dimension_numbers = #tpu.dot_dimension_numbers<[1], [0], [0], [1], [0, 0, 1, 1], [], []>} : vector<8x128xf32>, vector<128x128xf32>, vector<8x128xf32> -> vector<8x128xf32>
    %c3 = arith.constant 3 : index
    %c0_22 = arith.constant 0 : index
    %27 = vector.load %arg4[%c3, %c0_22] : memref<8x128xf32, #tpu.memory_space<vmem>>, vector<1x128xf32>
    %28 = vector.broadcast %27 : vector<1x128xf32> to vector<8x128xf32>
    %29 = arith.addf %26, %28 : vector<8x128xf32>
    %cst_23 = arith.constant 0.000000e+00 : f32
    %30 = vector.broadcast %cst_23 : f32 to vector<8x128xf32>
    %31 = arith.maximumf %29, %30 : vector<8x128xf32>
    %c4 = arith.constant 4 : index
    %c0_24 = arith.constant 0 : index
    %32 = vector.load %arg4[%c4, %c0_24] : memref<8x128xf32, #tpu.memory_space<vmem>>, vector<1x128xf32>
    %c5 = arith.constant 5 : index
    %c0_25 = arith.constant 0 : index
    %33 = vector.load %arg4[%c5, %c0_25] : memref<8x128xf32, #tpu.memory_space<vmem>>, vector<1x1xf32>
    %34 = vector.broadcast %32 : vector<1x128xf32> to vector<8x128xf32>
    %35 = arith.mulf %31, %34 : vector<8x128xf32>
    %cst_26 = arith.constant dense<0.000000e+00> : vector<8xf32>
    %36 = vector.multi_reduction <add>, %35, %cst_26 [1] : vector<8x128xf32> to vector<8xf32>
    %37 = vector.shape_cast %36 : vector<8xf32> to vector<8x1xf32>
    %38 = vector.broadcast %33 : vector<1x1xf32> to vector<8x1xf32>
    %39 = arith.addf %37, %38 : vector<8x1xf32>
    %c0_27 = arith.constant 0 : index
    %c0_28 = arith.constant 0 : index
    %40 = vector.load %arg5[%c0_27, %c0_28] : memref<8x1xf32, #tpu.memory_space<vmem>>, vector<8x1xf32>
    tpu.vector_store %arg5[%c0_27, %c0_28], %39 {strides = array<i32>} : memref<8x1xf32, #tpu.memory_space<vmem>>, vector<8x1xf32>,
    return
  }
  func.func @transform_0(%arg0: i32) -> (i32, i32) {
    %c0_i32 = arith.constant 0 : i32
    %c0_i32_0 = arith.constant 0 : i32
    return %arg0, %c0_i32 : i32, i32
  }
  func.func @transform_1(%arg0: i32) -> (i32, i32) {
    %c0_i32 = arith.constant 0 : i32
    %c0_i32_0 = arith.constant 0 : i32
    %c0_i32_1 = arith.constant 0 : i32
    return %c0_i32, %c0_i32_0 : i32, i32
  }
  func.func @transform_2(%arg0: i32) -> (i32, i32, i32) {
    %c0_i32 = arith.constant 0 : i32
    %c0_i32_0 = arith.constant 0 : i32
    %c0_i32_1 = arith.constant 0 : i32
    %c0_i32_2 = arith.constant 0 : i32
    return %c0_i32, %c0_i32_0, %c0_i32_1 : i32, i32, i32
  }
  func.func @transform_3(%arg0: i32) -> (i32, i32) {
    %c0_i32 = arith.constant 0 : i32
    %c0_i32_0 = arith.constant 0 : i32
    %c0_i32_1 = arith.constant 0 : i32
    return %c0_i32, %c0_i32_0 : i32, i32
  }
  func.func @transform_4(%arg0: i32) -> (i32, i32) {
    %c0_i32 = arith.constant 0 : i32
    %c0_i32_0 = arith.constant 0 : i32
    return %arg0, %c0_i32 : i32, i32
  }
}

module attributes {stable_mosaic.version = 11 : i64} {
  func.func @critic_kernel(%arg0: i32, %arg1: memref<8x128xf32, #tpu.memory_space<vmem>>, %arg2: memref<128x128xf32, #tpu.memory_space<vmem>>, %arg3: memref<3x128x128xf32, #tpu.memory_space<vmem>>, %arg4: memref<8x128xf32, #tpu.memory_space<vmem>>, %arg5: memref<8x1xf32, #tpu.memory_space<vmem>>) attributes {dimension_semantics = [#tpu.dimension_semantics<parallel>], iteration_bounds = array<i64: 1>, scalar_prefetch = 0 : i64, scratch_operands = 0 : i64, tpu.core_type = #tpu.core_type<tc>, window_params = [{transform_indices = @transform_0, window_bounds = array<i64: 8, 128>}, {pipeline_mode = #tpu.pipeline_mode<synchronous>, transform_indices = @transform_1, window_bounds = array<i64: 128, 128>}, {pipeline_mode = #tpu.pipeline_mode<synchronous>, transform_indices = @transform_2, window_bounds = array<i64: 3, 128, 128>}, {pipeline_mode = #tpu.pipeline_mode<synchronous>, transform_indices = @transform_3, window_bounds = array<i64: 8, 128>}, {transform_indices = @transform_4, window_bounds = array<i64: 8, 1>}]} {
    %c0 = arith.constant 0 : index
    %c0_0 = arith.constant 0 : index
    %0 = vector.load %arg1[%c0, %c0_0] : memref<8x128xf32, #tpu.memory_space<vmem>>, vector<8x128xf32>
    %c0_1 = arith.constant 0 : index
    %c0_2 = arith.constant 0 : index
    %1 = vector.load %arg2[%c0_1, %c0_2] : memref<128x128xf32, #tpu.memory_space<vmem>>, vector<128x128xf32>
    %cst = arith.constant dense<0.000000e+00> : vector<8x128xf32>
    %2 = tpu.matmul %0, %1, %cst {dimension_numbers = #tpu.dot_dimension_numbers<[1], [0], [0], [1], [0, 0, 1, 1], [], []>} : vector<8x128xf32>, vector<128x128xf32>, vector<8x128xf32> -> vector<8x128xf32>
    %c0_3 = arith.constant 0 : index
    %c0_4 = arith.constant 0 : index
    %3 = vector.load %arg4[%c0_3, %c0_4] : memref<8x128xf32, #tpu.memory_space<vmem>>, vector<1x128xf32>
    %4 = vector.broadcast %3 : vector<1x128xf32> to vector<8x128xf32>
    %5 = arith.addf %2, %4 : vector<8x128xf32>
    %cst_5 = arith.constant 0.000000e+00 : f32
    %6 = vector.broadcast %cst_5 : f32 to vector<8x128xf32>
    %7 = arith.maximumf %5, %6 : vector<8x128xf32>
    %c0_6 = arith.constant 0 : index
    %c0_7 = arith.constant 0 : index
    %c0_8 = arith.constant 0 : index
    %8 = vector.load %arg3[%c0_6, %c0_7, %c0_8] : memref<3x128x128xf32, #tpu.memory_space<vmem>>, vector<1x128x128xf32>
    %9 = vector.shape_cast %8 : vector<1x128x128xf32> to vector<128x128xf32>
    %cst_9 = arith.constant dense<0.000000e+00> : vector<8x128xf32>
    %10 = tpu.matmul %7, %9, %cst_9 {dimension_numbers = #tpu.dot_dimension_numbers<[1], [0], [0], [1], [0, 0, 1, 1], [], []>} : vector<8x128xf32>, vector<128x128xf32>, vector<8x128xf32> -> vector<8x128xf32>
    %c1 = arith.constant 1 : index
    %c0_10 = arith.constant 0 : index
    %11 = vector.load %arg4[%c1, %c0_10] : memref<8x128xf32, #tpu.memory_space<vmem>>, vector<1x128xf32>
    %12 = vector.broadcast %11 : vector<1x128xf32> to vector<8x128xf32>
    %13 = arith.addf %10, %12 : vector<8x128xf32>
    %cst_11 = arith.constant 0.000000e+00 : f32
    %14 = vector.broadcast %cst_11 : f32 to vector<8x128xf32>
    %15 = arith.maximumf %13, %14 : vector<8x128xf32>
    %c1_12 = arith.constant 1 : index
    %c0_13 = arith.constant 0 : index
    %c0_14 = arith.constant 0 : index
    %16 = vector.load %arg3[%c1_12, %c0_13, %c0_14] : memref<3x128x128xf32, #tpu.memory_space<vmem>>, vector<1x128x128xf32>
    %17 = vector.shape_cast %16 : vector<1x128x128xf32> to vector<128x128xf32>
    %cst_15 = arith.constant dense<0.000000e+00> : vector<8x128xf32>
    %18 = tpu.matmul %15, %17, %cst_15 {dimension_numbers = #tpu.dot_dimension_numbers<[1], [0], [0], [1], [0, 0, 1, 1], [], []>} : vector<8x128xf32>, vector<128x128xf32>, vector<8x128xf32> -> vector<8x128xf32>
    %c2 = arith.constant 2 : index
    %c0_16 = arith.constant 0 : index
    %19 = vector.load %arg4[%c2, %c0_16] : memref<8x128xf32, #tpu.memory_space<vmem>>, vector<1x128xf32>
    %20 = vector.broadcast %19 : vector<1x128xf32> to vector<8x128xf32>
    %21 = arith.addf %18, %20 : vector<8x128xf32>
    %cst_17 = arith.constant 0.000000e+00 : f32
    %22 = vector.broadcast %cst_17 : f32 to vector<8x128xf32>
    %23 = arith.maximumf %21, %22 : vector<8x128xf32>
    %c2_18 = arith.constant 2 : index
    %c0_19 = arith.constant 0 : index
    %c0_20 = arith.constant 0 : index
    %24 = vector.load %arg3[%c2_18, %c0_19, %c0_20] : memref<3x128x128xf32, #tpu.memory_space<vmem>>, vector<1x128x128xf32>
    %25 = vector.shape_cast %24 : vector<1x128x128xf32> to vector<128x128xf32>
    %cst_21 = arith.constant dense<0.000000e+00> : vector<8x128xf32>
    %26 = tpu.matmul %23, %25, %cst_21 {dimension_numbers = #tpu.dot_dimension_numbers<[1], [0], [0], [1], [0, 0, 1, 1], [], []>} : vector<8x128xf32>, vector<128x128xf32>, vector<8x128xf32> -> vector<8x128xf32>
    %c3 = arith.constant 3 : index
    %c0_22 = arith.constant 0 : index
    %27 = vector.load %arg4[%c3, %c0_22] : memref<8x128xf32, #tpu.memory_space<vmem>>, vector<1x128xf32>
    %28 = vector.broadcast %27 : vector<1x128xf32> to vector<8x128xf32>
    %29 = arith.addf %26, %28 : vector<8x128xf32>
    %cst_23 = arith.constant 0.000000e+00 : f32
    %30 = vector.broadcast %cst_23 : f32 to vector<8x128xf32>
    %31 = arith.maximumf %29, %30 : vector<8x128xf32>
    %c4 = arith.constant 4 : index
    %c0_24 = arith.constant 0 : index
    %32 = vector.load %arg4[%c4, %c0_24] : memref<8x128xf32, #tpu.memory_space<vmem>>, vector<1x128xf32>
    %c5 = arith.constant 5 : index
    %c0_25 = arith.constant 0 : index
    %33 = vector.load %arg4[%c5, %c0_25] : memref<8x128xf32, #tpu.memory_space<vmem>>, vector<1x1xf32>
    %34 = vector.broadcast %32 : vector<1x128xf32> to vector<8x128xf32>
    %35 = arith.mulf %31, %34 : vector<8x128xf32>
    %cst_26 = arith.constant dense<0.000000e+00> : vector<8xf32>
    %36 = vector.multi_reduction <add>, %35, %cst_26 [1] : vector<8x128xf32> to vector<8xf32>
    %37 = vector.shape_cast %36 : vector<8xf32> to vector<8x1xf32>
    %38 = vector.broadcast %33 : vector<1x1xf32> to vector<8x1xf32>
    %39 = arith.addf %37, %38 : vector<8x1xf32>
    %c0_27 = arith.constant 0 : index
    %c0_28 = arith.constant 0 : index
    %40 = vector.load %arg5[%c0_27, %c0_28] : memref<8x1xf32, #tpu.memory_space<vmem>>, vector<8x1xf32>
    tpu.vector_store %arg5[%c0_27, %c0_28], %39 {strides = array<i32>} : memref<8x1xf32, #tpu.memory_space<vmem>>, vector<8x1xf32>,
    return
  }
  func.func @transform_0(%arg0: i32) -> (i32, i32) {
    %c0_i32 = arith.constant 0 : i32
    %c0_i32_0 = arith.constant 0 : i32
    return %arg0, %c0_i32 : i32, i32
  }
  func.func @transform_1(%arg0: i32) -> (i32, i32) {
    %c0_i32 = arith.constant 0 : i32
    %c0_i32_0 = arith.constant 0 : i32
    %c0_i32_1 = arith.constant 0 : i32
    return %c0_i32, %c0_i32_0 : i32, i32
  }
  func.func @transform_2(%arg0: i32) -> (i32, i32, i32) {
    %c0_i32 = arith.constant 0 : i32
    %c0_i32_0 = arith.constant 0 : i32
    %c0_i32_1 = arith.constant 0 : i32
    %c0_i32_2 = arith.constant 0 : i32
    return %c0_i32, %c0_i32_0, %c0_i32_1 : i32, i32, i32
  }
  func.func @transform_3(%arg0: i32) -> (i32, i32) {
    %c0_i32 = arith.constant 0 : i32
    %c0_i32_0 = arith.constant 0 : i32
    %c0_i32_1 = arith.constant 0 : i32
    return %c0_i32, %c0_i32_0 : i32, i32
  }
  func.func @transform_4(%arg0: i32) -> (i32, i32) {
    %c0_i32 = arith.constant 0 : i32
    %c0_i32_0 = arith.constant 0 : i32
    return %arg0, %c0_i32 : i32, i32
  }
}

</mosaic_0001>

<llo_original>
// kernel: _critic_forward_impl.1
$region0: #{_critic_forward_impl.1}
  #allocation0 [shape = 'u32[]', space=smem, size = 0x4, offset = 0x4, fixed_abs, tag = 'smem constant byte address 0x4 - core index']
  #allocation1 [shape = 'u32[144,128]{1,0:T(1,128)}', space=vmem, size = 0x12000, scoped, tag = 'internal scratch']
  %s0 = inlined_call_operand.vmem [shape: f32[8,128], index: 0, kind: input, shape index: {}]
  %s1 = inlined_call_operand.hbm [shape: f32[128,128], index: 1, kind: input, shape index: {}]
  %s2 = inlined_call_operand.hbm [shape: f32[3,128,128], index: 2, kind: input, shape index: {}]
  %s3 = inlined_call_operand.vmem [shape: f32[8,128], index: 3, kind: input, shape index: {}]
  %s4 = inlined_call_operand.vmem [shape: f32[8,1], index: 4, kind: output, shape index: {}]
  %s5 = sld [smem:[#allocation0]]
  $region34: #{_critic_forward_impl.1} parent=0
    _
  %s7 = ssub.s32 1, %s5
  %s8 = scalar_select 0, %s7, %s5
  $region1: #{_critic_forward_impl.1} parent=0
    #allocation2 [shape = 'u8[65536]{0}', space=vmem, size = 0x10000, scoped, tag = 'input window, operand 1, single buffered']
    #allocation3 [shape = 's32[1]{0}', space=sflag, size = 0x4, scoped, tag = 'scoped memory for _critic_forward_impl.1']
    #allocation4 [shape = 'u8[196608]{0}', space=vmem, size = 0x30000, scoped, tag = 'input window, operand 2, single buffered']
    #allocation5 [shape = 's32[1]{0}', space=sflag, size = 0x4, scoped, tag = 'scoped memory for _critic_forward_impl.1']
    %9 = vsyncpa [#allocation3], 0
    %10 = vsyncpa [#allocation5], 0
    // Predicated region
    $region2: #{_critic_forward_impl.1} parent=1 // pred_check
      _
    $region3: #{_critic_forward_impl.1} parent=1 // pred_check_branch
      %12 = sbr.rel (0) target = $region5
    $region4: #{_critic_forward_impl.1} parent=1 // pred_region
      _
    $region5: #{_critic_forward_impl.1} parent=1 // pred_fallthru
      _
    // Predicated region
    $region6: #{_critic_forward_impl.1} parent=1 // pred_check
      _
    $region7: #{_critic_forward_impl.1} parent=1 // pred_check_branch
      %14 = sbr.rel (0) target = $region9
    $region8: #{_critic_forward_impl.1} parent=1 // pred_region
      %s16 = ssub.s32 2048, 2048
      %17 = vsyncadd [#allocation3], %s16
      %s18 = sshll.u32 [#allocation2], 4
      %s19 = int_to_ptr.vmem [resolvable:$true] %s18
      %24 = dma.hbm_to_vmem [thread:$0]  %s1, 2048, %s19, [#allocation3], 128, 128, 8
    $region9: #{_critic_forward_impl.1} parent=1 // pred_fallthru
      _
    // Predicated region
    $region10: #{_critic_forward_impl.1} parent=1 // pred_check
      _
    $region11: #{_critic_forward_impl.1} parent=1 // pred_check_branch
      %26 = sbr.rel (0) target = $region13
    $region12: #{_critic_forward_impl.1} parent=1 // pred_region
      %s28 = ssub.s32 6144, 6144
      %29 = vsyncadd [#allocation5], %s28
      %s30 = sshll.u32 [#allocation4], 4
      %s31 = int_to_ptr.vmem [resolvable:$true] %s30
      %36 = dma.hbm_to_vmem [thread:$0]  %s2, 6144, %s31, [#allocation5], 128, 128, 8
    $region13: #{_critic_forward_impl.1} parent=1 // pred_fallthru
      _
    // Predicated region
    $region14: #{_critic_forward_impl.1} parent=1 // pred_check
      _
    $region15: #{_critic_forward_impl.1} parent=1 // pred_check_branch
      %38 = sbr.rel (0) target = $region17
    $region16: #{_critic_forward_impl.1} parent=1 // pred_region
      _
    $region17: #{_critic_forward_impl.1} parent=1 // pred_fallthru
      _
    // Predicated region
    $region18: #{_critic_forward_impl.1} parent=1 // pred_check
      _
    $region19: #{_critic_forward_impl.1} parent=1 // pred_check_branch
      %40 = sbr.rel (0) target = $region21
    $region20: #{_critic_forward_impl.1} parent=1 // pred_region
      %41 = dma.done [#allocation3], 2048
    $region21: #{_critic_forward_impl.1} parent=1 // pred_fallthru
      _
    // Predicated region
    $region22: #{_critic_forward_impl.1} parent=1 // pred_check
      _
    $region23: #{_critic_forward_impl.1} parent=1 // pred_check_branch
      %43 = sbr.rel (0) target = $region25
    $region24: #{_critic_forward_impl.1} parent=1 // pred_region
      %44 = dma.done [#allocation5], 6144
    $region25: #{_critic_forward_impl.1} parent=1 // pred_fallthru
      _
    %v45 = vld [vmem:[%s0] sm:$0xff]
    %v46 = vld [vmem:[#allocation2] sm:$0xff]
    %v47 = vld [vmem:[#allocation2 + $0x8] sm:$0xff]
    %v48 = vld [vmem:[#allocation2 + $0x10] sm:$0xff]
    %v49 = vld [vmem:[#allocation2 + $0x18] sm:$0xff]
    %v50 = vld [vmem:[#allocation2 + $0x20] sm:$0xff]
    %v51 = vld [vmem:[#allocation2 + $0x28] sm:$0xff]
    %v52 = vld [vmem:[#allocation2 + $0x30] sm:$0xff]
    %v53 = vld [vmem:[#allocation2 + $0x38] sm:$0xff]
    %v54 = vld [vmem:[#allocation2 + $0x40] sm:$0xff]
    %v55 = vld [vmem:[#allocation2 + $0x48] sm:$0xff]
    %v56 = vld [vmem:[#allocation2 + $0x50] sm:$0xff]
    %v57 = vld [vmem:[#allocation2 + $0x58] sm:$0xff]
    %v58 = vld [vmem:[#allocation2 + $0x60] sm:$0xff]
    %v59 = vld [vmem:[#allocation2 + $0x68] sm:$0xff]
    %v60 = vld [vmem:[#allocation2 + $0x70] sm:$0xff]
    %v61 = vld [vmem:[#allocation2 + $0x78] sm:$0xff]
    %v62 = vld [vmem:[%s3] sm:$0x1]
    %v63 = vlaneseq
    %v64 = vshrl.u32 %v63, 7
    %v65 = vsub.s32 0, %v64
    %v66 = vrot.slane %v62, %v65
    %67 = vmatprep.subr.mxu0 0.0
    %68 = vmatpush1.msra.mxu0 %v46
    %69 = vmatprep.subr.mxu0 0.0
    %70 = vmatpush1.msra.mxu0 %v47
    %71 = vmatprep.subr.mxu0 0.0
    %72 = vmatpush1.msra.mxu0 %v48
    %73 = vmatprep.subr.mxu0 0.0
    %74 = vmatpush1.msra.mxu0 %v49
    %75 = vmatprep.subr.mxu0 0.0
    %76 = vmatpush1.msra.mxu0 %v50
    %77 = vmatprep.subr.mxu0 0.0
    %78 = vmatpush1.msra.mxu0 %v51
    %79 = vmatprep.subr.mxu0 0.0
    %80 = vmatpush1.msra.mxu0 %v52
    %81 = vmatprep.subr.mxu0 0.0
    %82 = vmatpush1.msra.mxu0 %v53
    %83 = vmatprep.subr.mxu0 0.0
    %84 = vmatpush1.msra.mxu0 %v54
    %85 = vmatprep.subr.mxu0 0.0
    %86 = vmatpush1.msra.mxu0 %v55
    %87 = vmatprep.subr.mxu0 0.0
    %88 = vmatpush1.msra.mxu0 %v56
    %89 = vmatprep.subr.mxu0 0.0
    %90 = vmatpush1.msra.mxu0 %v57
    %91 = vmatprep.subr.mxu0 0.0
    %92 = vmatpush1.msra.mxu0 %v58
    %93 = vmatprep.subr.mxu0 0.0
    %94 = vmatpush1.msra.mxu0 %v59
    %95 = vmatprep.subr.mxu0 0.0
    %96 = vmatpush1.msra.mxu0 %v60
    %97 = vmatprep.subr.mxu0 0.0
    %98 = vmatpush1.msra.mxu0 %v61
    %99 = vmatprep.subr.mxu0 0.0
    %100 = vmatpush1.msra.mxu0 0.0
    %101 = vmatprep.subr.mxu0 0.0
    %102 = vmatpush1.msra.mxu0 0.0
    %103 = vmatprep.subr.mxu0 0.0
    %104 = vmatpush1.msra.mxu0 0.0
    %105 = vmatprep.subr.mxu0 0.0
    %106 = vmatpush1.msra.mxu0 0.0
    %107 = vmatprep.subr.mxu0 0.0
    %108 = vmatpush1.msra.mxu0 0.0
    %109 = vmatprep.subr.mxu0 0.0
    %110 = vmatpush1.msra.mxu0 0.0
    %111 = vmatprep.subr.mxu0 0.0
    %112 = vmatpush1.msra.mxu0 0.0
    %113 = vmatprep.subr.mxu0 0.0
    %114 = vmatpush1.msra.mxu0 0.0
    %115 = vmatprep.subr.mxu0 0.0
    %116 = vmatpush1.msra.mxu0 0.0
    %117 = vmatprep.subr.mxu0 0.0
    %118 = vmatpush1.msra.mxu0 0.0
    %119 = vmatprep.subr.mxu0 0.0
    %120 = vmatpush1.msra.mxu0 0.0
    %121 = vmatprep.subr.mxu0 0.0
    %122 = vmatpush1.msra.mxu0 0.0
    %123 = vmatprep.subr.mxu0 0.0
    %124 = vmatpush1.msra.mxu0 0.0
    %125 = vmatprep.subr.mxu0 0.0
    %126 = vmatpush1.msra.mxu0 0.0
    %127 = vmatprep.subr.mxu0 0.0
    %128 = vmatpush1.msra.mxu0 0.0
    %129 = vmatprep.subr.mxu0 0.0
    %130 = vmatpush1.msra.mxu0 0.0
    %131 = vmatprep.mubr.f32.mxu0 0.0
    %132 = vmatmul.mubr.f32.gmra.mrb[0].mxu0 %v45
    %v133 = vpop.f32.mrb[0].mxu0
    %v134 = vadd.f32 %v66, %v133
    %v135 = vpop.f32.mrb[0].mxu0
    %136 = vdwg.mxu0
    %v137 = vmax.f32 %v134, 0.0
    %v138 = vld [vmem:[#allocation4] sm:$0xff]
    %v139 = vld [vmem:[#allocation4 + $0x8] sm:$0xff]
    %v140 = vld [vmem:[#allocation4 + $0x10] sm:$0xff]
    %v141 = vld [vmem:[#allocation4 + $0x18] sm:$0xff]
    %v142 = vld [vmem:[#allocation4 + $0x20] sm:$0xff]
    %v143 = vld [vmem:[#allocation4 + $0x28] sm:$0xff]
    %v144 = vld [vmem:[#allocation4 + $0x30] sm:$0xff]
    %v145 = vld [vmem:[#allocation4 + $0x38] sm:$0xff]
    %v146 = vld [vmem:[#allocation4 + $0x40] sm:$0xff]
    %v147 = vld [vmem:[#allocation4 + $0x48] sm:$0xff]
    %v148 = vld [vmem:[#allocation4 + $0x50] sm:$0xff]
    %v149 = vld [vmem:[#allocation4 + $0x58] sm:$0xff]
    %v150 = vld [vmem:[#allocation4 + $0x60] sm:$0xff]
    %v151 = vld [vmem:[#allocation4 + $0x68] sm:$0xff]
    %v152 = vld [vmem:[#allocation4 + $0x70] sm:$0xff]
    %v153 = vld [vmem:[#allocation4 + $0x78] sm:$0xff]
    %v154 = vld [vmem:[%s3 + $0x1] sm:$0x1]
    %v155 = vlaneseq
    %v156 = vshrl.u32 %v155, 7
    %v157 = vsub.s32 0, %v156
    %v158 = vrot.slane %v154, %v157
    %159 = vmatprep.subr.mxu0 0.0
    %160 = vmatpush1.msra.mxu0 %v138
    %161 = vmatprep.subr.mxu0 0.0
    %162 = vmatpush1.msra.mxu0 %v139
    %163 = vmatprep.subr.mxu0 0.0
    %164 = vmatpush1.msra.mxu0 %v140
    %165 = vmatprep.subr.mxu0 0.0
    %166 = vmatpush1.msra.mxu0 %v141
    %167 = vmatprep.subr.mxu0 0.0
    %168 = vmatpush1.msra.mxu0 %v142
    %169 = vmatprep.subr.mxu0 0.0
    %170 = vmatpush1.msra.mxu0 %v143
    %171 = vmatprep.subr.mxu0 0.0
    %172 = vmatpush1.msra.mxu0 %v144
    %173 = vmatprep.subr.mxu0 0.0
    %174 = vmatpush1.msra.mxu0 %v145
    %175 = vmatprep.subr.mxu0 0.0
    %176 = vmatpush1.msra.mxu0 %v146
    %177 = vmatprep.subr.mxu0 0.0
    %178 = vmatpush1.msra.mxu0 %v147
    %179 = vmatprep.subr.mxu0 0.0
    %180 = vmatpush1.msra.mxu0 %v148
    %181 = vmatprep.subr.mxu0 0.0
    %182 = vmatpush1.msra.mxu0 %v149
    %183 = vmatprep.subr.mxu0 0.0
    %184 = vmatpush1.msra.mxu0 %v150
    %185 = vmatprep.subr.mxu0 0.0
    %186 = vmatpush1.msra.mxu0 %v151
    %187 = vmatprep.subr.mxu0 0.0
    %188 = vmatpush1.msra.mxu0 %v152
    %189 = vmatprep.subr.mxu0 0.0
    %190 = vmatpush1.msra.mxu0 %v153
    %191 = vmatprep.subr.mxu0 0.0
    %192 = vmatpush1.msra.mxu0 0.0
    %193 = vmatprep.subr.mxu0 0.0
    %194 = vmatpush1.msra.mxu0 0.0
    %195 = vmatprep.subr.mxu0 0.0
    %196 = vmatpush1.msra.mxu0 0.0
    %197 = vmatprep.subr.mxu0 0.0
    %198 = vmatpush1.msra.mxu0 0.0
    %199 = vmatprep.subr.mxu0 0.0
    %200 = vmatpush1.msra.mxu0 0.0
    %201 = vmatprep.subr.mxu0 0.0
    %202 = vmatpush1.msra.mxu0 0.0
    %203 = vmatprep.subr.mxu0 0.0
    %204 = vmatpush1.msra.mxu0 0.0
    %205 = vmatprep.subr.mxu0 0.0
    %206 = vmatpush1.msra.mxu0 0.0
    %207 = vmatprep.subr.mxu0 0.0
    %208 = vmatpush1.msra.mxu0 0.0
    %209 = vmatprep.subr.mxu0 0.0
    %210 = vmatpush1.msra.mxu0 0.0
    %211 = vmatprep.subr.mxu0 0.0
    %212 = vmatpush1.msra.mxu0 0.0
    %213 = vmatprep.subr.mxu0 0.0
    %214 = vmatpush1.msra.mxu0 0.0
    %215 = vmatprep.subr.mxu0 0.0
    %216 = vmatpush1.msra.mxu0 0.0
    %217 = vmatprep.subr.mxu0 0.0
    %218 = vmatpush1.msra.mxu0 0.0
    %219 = vmatprep.subr.mxu0 0.0
    %220 = vmatpush1.msra.mxu0 0.0
    %221 = vmatprep.subr.mxu0 0.0
    %222 = vmatpush1.msra.mxu0 0.0
    %223 = vmatprep.mubr.f32.mxu0 0.0
    %224 = vmatmul.mubr.f32.gmra.mrb[0].mxu0 %v137
    %v225 = vpop.f32.mrb[0].mxu0
    %v226 = vadd.f32 %v158, %v225
    %v227 = vpop.f32.mrb[0].mxu0
    %228 = vdwg.mxu0
    %v229 = vmax.f32 %v226, 0.0
    %s230 = scalar_lea.vmem [#allocation4], 128
    %v231 = vld [vmem:[%s230] sm:$0xff]
    %v232 = vld [vmem:[%s230 + $0x8] sm:$0xff]
    %v233 = vld [vmem:[%s230 + $0x10] sm:$0xff]
    %v234 = vld [vmem:[%s230 + $0x18] sm:$0xff]
    %v235 = vld [vmem:[%s230 + $0x20] sm:$0xff]
    %v236 = vld [vmem:[%s230 + $0x28] sm:$0xff]
    %v237 = vld [vmem:[%s230 + $0x30] sm:$0xff]
    %v238 = vld [vmem:[%s230 + $0x38] sm:$0xff]
    %v239 = vld [vmem:[%s230 + $0x40] sm:$0xff]
    %v240 = vld [vmem:[%s230 + $0x48] sm:$0xff]
    %v241 = vld [vmem:[%s230 + $0x50] sm:$0xff]
    %v242 = vld [vmem:[%s230 + $0x58] sm:$0xff]
    %v243 = vld [vmem:[%s230 + $0x60] sm:$0xff]
    %v244 = vld [vmem:[%s230 + $0x68] sm:$0xff]
    %v245 = vld [vmem:[%s230 + $0x70] sm:$0xff]
    %v246 = vld [vmem:[%s230 + $0x78] sm:$0xff]
    %v247 = vld [vmem:[%s3 + $0x2] sm:$0x1]
    %v248 = vlaneseq
    %v249 = vshrl.u32 %v248, 7
    %v250 = vsub.s32 0, %v249
    %v251 = vrot.slane %v247, %v250
    %252 = vmatprep.subr.mxu0 0.0
    %253 = vmatpush1.msra.mxu0 %v231
    %254 = vmatprep.subr.mxu0 0.0
    %255 = vmatpush1.msra.mxu0 %v232
    %256 = vmatprep.subr.mxu0 0.0
    %257 = vmatpush1.msra.mxu0 %v233
    %258 = vmatprep.subr.mxu0 0.0
    %259 = vmatpush1.msra.mxu0 %v234
    %260 = vmatprep.subr.mxu0 0.0
    %261 = vmatpush1.msra.mxu0 %v235
    %262 = vmatprep.subr.mxu0 0.0
    %263 = vmatpush1.msra.mxu0 %v236
    %264 = vmatprep.subr.mxu0 0.0
    %265 = vmatpush1.msra.mxu0 %v237
    %266 = vmatprep.subr.mxu0 0.0
    %267 = vmatpush1.msra.mxu0 %v238
    %268 = vmatprep.subr.mxu0 0.0
    %269 = vmatpush1.msra.mxu0 %v239
    %270 = vmatprep.subr.mxu0 0.0
    %271 = vmatpush1.msra.mxu0 %v240
    %272 = vmatprep.subr.mxu0 0.0
    %273 = vmatpush1.msra.mxu0 %v241
    %274 = vmatprep.subr.mxu0 0.0
    %275 = vmatpush1.msra.mxu0 %v242
    %276 = vmatprep.subr.mxu0 0.0
    %277 = vmatpush1.msra.mxu0 %v243
    %278 = vmatprep.subr.mxu0 0.0
    %279 = vmatpush1.msra.mxu0 %v244
    %280 = vmatprep.subr.mxu0 0.0
    %281 = vmatpush1.msra.mxu0 %v245
    %282 = vmatprep.subr.mxu0 0.0
    %283 = vmatpush1.msra.mxu0 %v246
    %284 = vmatprep.subr.mxu0 0.0
    %285 = vmatpush1.msra.mxu0 0.0
    %286 = vmatprep.subr.mxu0 0.0
    %287 = vmatpush1.msra.mxu0 0.0
    %288 = vmatprep.subr.mxu0 0.0
    %289 = vmatpush1.msra.mxu0 0.0
    %290 = vmatprep.subr.mxu0 0.0
    %291 = vmatpush1.msra.mxu0 0.0
    %292 = vmatprep.subr.mxu0 0.0
    %293 = vmatpush1.msra.mxu0 0.0
    %294 = vmatprep.subr.mxu0 0.0
    %295 = vmatpush1.msra.mxu0 0.0
    %296 = vmatprep.subr.mxu0 0.0
    %297 = vmatpush1.msra.mxu0 0.0
    %298 = vmatprep.subr.mxu0 0.0
    %299 = vmatpush1.msra.mxu0 0.0
    %300 = vmatprep.subr.mxu0 0.0
    %301 = vmatpush1.msra.mxu0 0.0
    %302 = vmatprep.subr.mxu0 0.0
    %303 = vmatpush1.msra.mxu0 0.0
    %304 = vmatprep.subr.mxu0 0.0
    %305 = vmatpush1.msra.mxu0 0.0
    %306 = vmatprep.subr.mxu0 0.0
    %307 = vmatpush1.msra.mxu0 0.0
    %308 = vmatprep.subr.mxu0 0.0
    %309 = vmatpush1.msra.mxu0 0.0
    %310 = vmatprep.subr.mxu0 0.0
    %311 = vmatpush1.msra.mxu0 0.0
    %312 = vmatprep.subr.mxu0 0.0
    %313 = vmatpush1.msra.mxu0 0.0
    %314 = vmatprep.subr.mxu0 0.0
    %315 = vmatpush1.msra.mxu0 0.0
    %316 = vmatprep.mubr.f32.mxu0 0.0
    %317 = vmatmul.mubr.f32.gmra.mrb[0].mxu0 %v229
    %v318 = vpop.f32.mrb[0].mxu0
    %v319 = vadd.f32 %v251, %v318
    %v320 = vpop.f32.mrb[0].mxu0
    %321 = vdwg.mxu0
    %v322 = vmax.f32 %v319, 0.0
    %s323 = scalar_lea.vmem [#allocation4], 256
    %v324 = vld [vmem:[%s323] sm:$0xff]
    %v325 = vld [vmem:[%s323 + $0x8] sm:$0xff]
    %v326 = vld [vmem:[%s323 + $0x10] sm:$0xff]
    %v327 = vld [vmem:[%s323 + $0x18] sm:$0xff]
    %v328 = vld [vmem:[%s323 + $0x20] sm:$0xff]
    %v329 = vld [vmem:[%s323 + $0x28] sm:$0xff]
    %v330 = vld [vmem:[%s323 + $0x30] sm:$0xff]
    %v331 = vld [vmem:[%s323 + $0x38] sm:$0xff]
    %v332 = vld [vmem:[%s323 + $0x40] sm:$0xff]
    %v333 = vld [vmem:[%s323 + $0x48] sm:$0xff]
    %v334 = vld [vmem:[%s323 + $0x50] sm:$0xff]
    %v335 = vld [vmem:[%s323 + $0x58] sm:$0xff]
    %v336 = vld [vmem:[%s323 + $0x60] sm:$0xff]
    %v337 = vld [vmem:[%s323 + $0x68] sm:$0xff]
    %v338 = vld [vmem:[%s323 + $0x70] sm:$0xff]
    %v339 = vld [vmem:[%s323 + $0x78] sm:$0xff]
    %v340 = vld [vmem:[%s3 + $0x3] sm:$0x1]
    %v341 = vlaneseq
    %v342 = vshrl.u32 %v341, 7
    %v343 = vsub.s32 0, %v342
    %v344 = vrot.slane %v340, %v343
    %345 = vmatprep.subr.mxu0 0.0
    %346 = vmatpush1.msra.mxu0 %v324
    %347 = vmatprep.subr.mxu0 0.0
    %348 = vmatpush1.msra.mxu0 %v325
    %349 = vmatprep.subr.mxu0 0.0
    %350 = vmatpush1.msra.mxu0 %v326
    %351 = vmatprep.subr.mxu0 0.0
    %352 = vmatpush1.msra.mxu0 %v327
    %353 = vmatprep.subr.mxu0 0.0
    %354 = vmatpush1.msra.mxu0 %v328
    %355 = vmatprep.subr.mxu0 0.0
    %356 = vmatpush1.msra.mxu0 %v329
    %357 = vmatprep.subr.mxu0 0.0
    %358 = vmatpush1.msra.mxu0 %v330
    %359 = vmatprep.subr.mxu0 0.0
    %360 = vmatpush1.msra.mxu0 %v331
    %361 = vmatprep.subr.mxu0 0.0
    %362 = vmatpush1.msra.mxu0 %v332
    %363 = vmatprep.subr.mxu0 0.0
    %364 = vmatpush1.msra.mxu0 %v333
    %365 = vmatprep.subr.mxu0 0.0
    %366 = vmatpush1.msra.mxu0 %v334
    %367 = vmatprep.subr.mxu0 0.0
    %368 = vmatpush1.msra.mxu0 %v335
    %369 = vmatprep.subr.mxu0 0.0
    %370 = vmatpush1.msra.mxu0 %v336
    %371 = vmatprep.subr.mxu0 0.0
    %372 = vmatpush1.msra.mxu0 %v337
    %373 = vmatprep.subr.mxu0 0.0
    %374 = vmatpush1.msra.mxu0 %v338
    %375 = vmatprep.subr.mxu0 0.0
    %376 = vmatpush1.msra.mxu0 %v339
    %377 = vmatprep.subr.mxu0 0.0
    %378 = vmatpush1.msra.mxu0 0.0
    %379 = vmatprep.subr.mxu0 0.0
    %380 = vmatpush1.msra.mxu0 0.0
    %381 = vmatprep.subr.mxu0 0.0
    %382 = vmatpush1.msra.mxu0 0.0
    %383 = vmatprep.subr.mxu0 0.0
    %384 = vmatpush1.msra.mxu0 0.0
    %385 = vmatprep.subr.mxu0 0.0
    %386 = vmatpush1.msra.mxu0 0.0
    %387 = vmatprep.subr.mxu0 0.0
    %388 = vmatpush1.msra.mxu0 0.0
    %389 = vmatprep.subr.mxu0 0.0
    %390 = vmatpush1.msra.mxu0 0.0
    %391 = vmatprep.subr.mxu0 0.0
    %392 = vmatpush1.msra.mxu0 0.0
    %393 = vmatprep.subr.mxu0 0.0
    %394 = vmatpush1.msra.mxu0 0.0
    %395 = vmatprep.subr.mxu0 0.0
    %396 = vmatpush1.msra.mxu0 0.0
    %397 = vmatprep.subr.mxu0 0.0
    %398 = vmatpush1.msra.mxu0 0.0
    %399 = vmatprep.subr.mxu0 0.0
    %400 = vmatpush1.msra.mxu0 0.0
    %401 = vmatprep.subr.mxu0 0.0
    %402 = vmatpush1.msra.mxu0 0.0
    %403 = vmatprep.subr.mxu0 0.0
    %404 = vmatpush1.msra.mxu0 0.0
    %405 = vmatprep.subr.mxu0 0.0
    %406 = vmatpush1.msra.mxu0 0.0
    %407 = vmatprep.subr.mxu0 0.0
    %408 = vmatpush1.msra.mxu0 0.0
    %409 = vmatprep.mubr.f32.mxu0 0.0
    %410 = vmatmul.mubr.f32.gmra.mrb[0].mxu0 %v322
    %v411 = vpop.f32.mrb[0].mxu0
    %v412 = vadd.f32 %v344, %v411
    %v413 = vpop.f32.mrb[0].mxu0
    %414 = vdwg.mxu0
    %v415 = vmax.f32 %v412, 0.0
    %v416 = vld [vmem:[%s3 + $0x4] sm:$0x1]
    %v417 = vld [vmem:[%s3 + $0x5] sm:$0x1]
    %v418 = vlaneseq
    %v419 = vshrl.u32 %v418, 7
    %v420 = vsub.s32 0, %v419
    %v421 = vrot.slane %v416, %v420
    %v422 = vmul.f32 %v415, %v421
    %423 = vadd.xlane.f32.xlu0 %v422
    %v424 = vpop.xlane.xlu0 %423
    %v425 = vlaneseq
    %v426 = vshrl.u32 %v425, 7
    %v427 = vsub.s32 0, %v426
    %v428 = vrot.slane %v417, %v427
    %v429 = vadd.f32 %v424, %v428
    %vm430 = vcmask 7168
    %431 = vst.msk [vmem:[%s4] sm:$0xff] %vm430, %v429
    // Predicated region
    $region26: #{_critic_forward_impl.1} parent=1 // pred_check
      _
    $region27: #{_critic_forward_impl.1} parent=1 // pred_check_branch
      %433 = sbr.rel (0) target = $region29
    $region28: #{_critic_forward_impl.1} parent=1 // pred_region
      _
    $region29: #{_critic_forward_impl.1} parent=1 // pred_fallthru
      _
    // Predicated region
    $region30: #{_critic_forward_impl.1} parent=1 // pred_check
      _
    $region31: #{_critic_forward_impl.1} parent=1 // pred_check_branch
      %435 = sbr.rel (0) target = $region33
    $region32: #{_critic_forward_impl.1} parent=1 // pred_region
      _
    $region33: #{_critic_forward_impl.1} parent=1 // pred_fallthru
      _
    %436 = vsyncpa [#allocation3], 1
    %437 = vsyncpa [#allocation5], 1

// kernel: _critic_forward_impl.1
$region0: #{_critic_forward_impl.1}
  #allocation0 [shape = 'u32[]', space=smem, size = 0x4, offset = 0x4, fixed_abs, tag = 'smem constant byte address 0x4 - core index']
  #allocation1 [shape = 'u32[144,128]{1,0:T(1,128)}', space=vmem, size = 0x12000, scoped, tag = 'internal scratch']
  %s0 = inlined_call_operand.vmem [shape: f32[8,128], index: 0, kind: input, shape index: {}]
  %s1 = inlined_call_operand.hbm [shape: f32[128,128], index: 1, kind: input, shape index: {}]
  %s2 = inlined_call_operand.hbm [shape: f32[3,128,128], index: 2, kind: input, shape index: {}]
  %s3 = inlined_call_operand.vmem [shape: f32[8,128], index: 3, kind: input, shape index: {}]
  %s4 = inlined_call_operand.vmem [shape: f32[8,1], index: 4, kind: output, shape index: {}]
  %s5 = sld [smem:[#allocation0]]
  $region34: #{_critic_forward_impl.1} parent=0
    _
  %s7 = ssub.s32 1, %s5
  %s8 = scalar_select 0, %s7, %s5
  $region1: #{_critic_forward_impl.1} parent=0
    #allocation2 [shape = 'u8[65536]{0}', space=vmem, size = 0x10000, scoped, tag = 'input window, operand 1, single buffered']
    #allocation3 [shape = 's32[1]{0}', space=sflag, size = 0x4, scoped, tag = 'scoped memory for _critic_forward_impl.1']
    #allocation4 [shape = 'u8[196608]{0}', space=vmem, size = 0x30000, scoped, tag = 'input window, operand 2, single buffered']
    #allocation5 [shape = 's32[1]{0}', space=sflag, size = 0x4, scoped, tag = 'scoped memory for _critic_forward_impl.1']
    %9 = vsyncpa [#allocation3], 0
    %10 = vsyncpa [#allocation5], 0
    // Predicated region
    $region2: #{_critic_forward_impl.1} parent=1 // pred_check
      _
    $region3: #{_critic_forward_impl.1} parent=1 // pred_check_branch
      %12 = sbr.rel (0) target = $region5
    $region4: #{_critic_forward_impl.1} parent=1 // pred_region
      _
    $region5: #{_critic_forward_impl.1} parent=1 // pred_fallthru
      _
    // Predicated region
    $region6: #{_critic_forward_impl.1} parent=1 // pred_check
      _
    $region7: #{_critic_forward_impl.1} parent=1 // pred_check_branch
      %14 = sbr.rel (0) target = $region9
    $region8: #{_critic_forward_impl.1} parent=1 // pred_region
      %s16 = ssub.s32 2048, 2048
      %17 = vsyncadd [#allocation3], %s16
      %s18 = sshll.u32 [#allocation2], 4
      %s19 = int_to_ptr.vmem [resolvable:$true] %s18
      %24 = dma.hbm_to_vmem [thread:$0]  %s1, 2048, %s19, [#allocation3], 128, 128, 8
    $region9: #{_critic_forward_impl.1} parent=1 // pred_fallthru
      _
    // Predicated region
    $region10: #{_critic_forward_impl.1} parent=1 // pred_check
      _
    $region11: #{_critic_forward_impl.1} parent=1 // pred_check_branch
      %26 = sbr.rel (0) target = $region13
    $region12: #{_critic_forward_impl.1} parent=1 // pred_region
      %s28 = ssub.s32 6144, 6144
      %29 = vsyncadd [#allocation5], %s28
      %s30 = sshll.u32 [#allocation4], 4
      %s31 = int_to_ptr.vmem [resolvable:$true] %s30
      %36 = dma.hbm_to_vmem [thread:$0]  %s2, 6144, %s31, [#allocation5], 128, 128, 8
    $region13: #{_critic_forward_impl.1} parent=1 // pred_fallthru
      _
    // Predicated region
    $region14: #{_critic_forward_impl.1} parent=1 // pred_check
      _
    $region15: #{_critic_forward_impl.1} parent=1 // pred_check_branch
      %38 = sbr.rel (0) target = $region17
    $region16: #{_critic_forward_impl.1} parent=1 // pred_region
      _
    $region17: #{_critic_forward_impl.1} parent=1 // pred_fallthru
      _
    // Predicated region
    $region18: #{_critic_forward_impl.1} parent=1 // pred_check
      _
    $region19: #{_critic_forward_impl.1} parent=1 // pred_check_branch
      %40 = sbr.rel (0) target = $region21
    $region20: #{_critic_forward_impl.1} parent=1 // pred_region
      %41 = dma.done [#allocation3], 2048
    $region21: #{_critic_forward_impl.1} parent=1 // pred_fallthru
      _
    // Predicated region
    $region22: #{_critic_forward_impl.1} parent=1 // pred_check
      _
    $region23: #{_critic_forward_impl.1} parent=1 // pred_check_branch
      %43 = sbr.rel (0) target = $region25
    $region24: #{_critic_forward_impl.1} parent=1 // pred_region
      %44 = dma.done [#allocation5], 6144
    $region25: #{_critic_forward_impl.1} parent=1 // pred_fallthru
      _
    %v45 = vld [vmem:[%s0] sm:$0xff]
    %v46 = vld [vmem:[#allocation2] sm:$0xff]
    %v47 = vld [vmem:[#allocation2 + $0x8] sm:$0xff]
    %v48 = vld [vmem:[#allocation2 + $0x10] sm:$0xff]
    %v49 = vld [vmem:[#allocation2 + $0x18] sm:$0xff]
    %v50 = vld [vmem:[#allocation2 + $0x20] sm:$0xff]
    %v51 = vld [vmem:[#allocation2 + $0x28] sm:$0xff]
    %v52 = vld [vmem:[#allocation2 + $0x30] sm:$0xff]
    %v53 = vld [vmem:[#allocation2 + $0x38] sm:$0xff]
    %v54 = vld [vmem:[#allocation2 + $0x40] sm:$0xff]
    %v55 = vld [vmem:[#allocation2 + $0x48] sm:$0xff]
    %v56 = vld [vmem:[#allocation2 + $0x50] sm:$0xff]
    %v57 = vld [vmem:[#allocation2 + $0x58] sm:$0xff]
    %v58 = vld [vmem:[#allocation2 + $0x60] sm:$0xff]
    %v59 = vld [vmem:[#allocation2 + $0x68] sm:$0xff]
    %v60 = vld [vmem:[#allocation2 + $0x70] sm:$0xff]
    %v61 = vld [vmem:[#allocation2 + $0x78] sm:$0xff]
    %v62 = vld [vmem:[%s3] sm:$0x1]
    %v63 = vlaneseq
    %v64 = vshrl.u32 %v63, 7
    %v65 = vsub.s32 0, %v64
    %v66 = vrot.slane %v62, %v65
    %67 = vmatprep.subr.mxu0 0.0
    %68 = vmatpush1.msra.mxu0 %v46
    %69 = vmatprep.subr.mxu0 0.0
    %70 = vmatpush1.msra.mxu0 %v47
    %71 = vmatprep.subr.mxu0 0.0
    %72 = vmatpush1.msra.mxu0 %v48
    %73 = vmatprep.subr.mxu0 0.0
    %74 = vmatpush1.msra.mxu0 %v49
    %75 = vmatprep.subr.mxu0 0.0
    %76 = vmatpush1.msra.mxu0 %v50
    %77 = vmatprep.subr.mxu0 0.0
    %78 = vmatpush1.msra.mxu0 %v51
    %79 = vmatprep.subr.mxu0 0.0
    %80 = vmatpush1.msra.mxu0 %v52
    %81 = vmatprep.subr.mxu0 0.0
    %82 = vmatpush1.msra.mxu0 %v53
    %83 = vmatprep.subr.mxu0 0.0
    %84 = vmatpush1.msra.mxu0 %v54
    %85 = vmatprep.subr.mxu0 0.0
    %86 = vmatpush1.msra.mxu0 %v55
    %87 = vmatprep.subr.mxu0 0.0
    %88 = vmatpush1.msra.mxu0 %v56
    %89 = vmatprep.subr.mxu0 0.0
    %90 = vmatpush1.msra.mxu0 %v57
    %91 = vmatprep.subr.mxu0 0.0
    %92 = vmatpush1.msra.mxu0 %v58
    %93 = vmatprep.subr.mxu0 0.0
    %94 = vmatpush1.msra.mxu0 %v59
    %95 = vmatprep.subr.mxu0 0.0
    %96 = vmatpush1.msra.mxu0 %v60
    %97 = vmatprep.subr.mxu0 0.0
    %98 = vmatpush1.msra.mxu0 %v61
    %99 = vmatprep.subr.mxu0 0.0
    %100 = vmatpush1.msra.mxu0 0.0
    %101 = vmatprep.subr.mxu0 0.0
    %102 = vmatpush1.msra.mxu0 0.0
    %103 = vmatprep.subr.mxu0 0.0
    %104 = vmatpush1.msra.mxu0 0.0
    %105 = vmatprep.subr.mxu0 0.0
    %106 = vmatpush1.msra.mxu0 0.0
    %107 = vmatprep.subr.mxu0 0.0
    %108 = vmatpush1.msra.mxu0 0.0
    %109 = vmatprep.subr.mxu0 0.0
    %110 = vmatpush1.msra.mxu0 0.0
    %111 = vmatprep.subr.mxu0 0.0
    %112 = vmatpush1.msra.mxu0 0.0
    %113 = vmatprep.subr.mxu0 0.0
    %114 = vmatpush1.msra.mxu0 0.0
    %115 = vmatprep.subr.mxu0 0.0
    %116 = vmatpush1.msra.mxu0 0.0
    %117 = vmatprep.subr.mxu0 0.0
    %118 = vmatpush1.msra.mxu0 0.0
    %119 = vmatprep.subr.mxu0 0.0
    %120 = vmatpush1.msra.mxu0 0.0
    %121 = vmatprep.subr.mxu0 0.0
    %122 = vmatpush1.msra.mxu0 0.0
    %123 = vmatprep.subr.mxu0 0.0
    %124 = vmatpush1.msra.mxu0 0.0
    %125 = vmatprep.subr.mxu0 0.0
    %126 = vmatpush1.msra.mxu0 0.0
    %127 = vmatprep.subr.mxu0 0.0
    %128 = vmatpush1.msra.mxu0 0.0
    %129 = vmatprep.subr.mxu0 0.0
    %130 = vmatpush1.msra.mxu0 0.0
    %131 = vmatprep.mubr.f32.mxu0 0.0
    %132 = vmatmul.mubr.f32.gmra.mrb[0].mxu0 %v45
    %v133 = vpop.f32.mrb[0].mxu0
    %v134 = vadd.f32 %v66, %v133
    %v135 = vpop.f32.mrb[0].mxu0
    %136 = vdwg.mxu0
    %v137 = vmax.f32 %v134, 0.0
    %v138 = vld [vmem:[#allocation4] sm:$0xff]
    %v139 = vld [vmem:[#allocation4 + $0x8] sm:$0xff]
    %v140 = vld [vmem:[#allocation4 + $0x10] sm:$0xff]
    %v141 = vld [vmem:[#allocation4 + $0x18] sm:$0xff]
    %v142 = vld [vmem:[#allocation4 + $0x20] sm:$0xff]
    %v143 = vld [vmem:[#allocation4 + $0x28] sm:$0xff]
    %v144 = vld [vmem:[#allocation4 + $0x30] sm:$0xff]
    %v145 = vld [vmem:[#allocation4 + $0x38] sm:$0xff]
    %v146 = vld [vmem:[#allocation4 + $0x40] sm:$0xff]
    %v147 = vld [vmem:[#allocation4 + $0x48] sm:$0xff]
    %v148 = vld [vmem:[#allocation4 + $0x50] sm:$0xff]
    %v149 = vld [vmem:[#allocation4 + $0x58] sm:$0xff]
    %v150 = vld [vmem:[#allocation4 + $0x60] sm:$0xff]
    %v151 = vld [vmem:[#allocation4 + $0x68] sm:$0xff]
    %v152 = vld [vmem:[#allocation4 + $0x70] sm:$0xff]
    %v153 = vld [vmem:[#allocation4 + $0x78] sm:$0xff]
    %v154 = vld [vmem:[%s3 + $0x1] sm:$0x1]
    %v155 = vlaneseq
    %v156 = vshrl.u32 %v155, 7
    %v157 = vsub.s32 0, %v156
    %v158 = vrot.slane %v154, %v157
    %159 = vmatprep.subr.mxu0 0.0
    %160 = vmatpush1.msra.mxu0 %v138
    %161 = vmatprep.subr.mxu0 0.0
    %162 = vmatpush1.msra.mxu0 %v139
    %163 = vmatprep.subr.mxu0 0.0
    %164 = vmatpush1.msra.mxu0 %v140
    %165 = vmatprep.subr.mxu0 0.0
    %166 = vmatpush1.msra.mxu0 %v141
    %167 = vmatprep.subr.mxu0 0.0
    %168 = vmatpush1.msra.mxu0 %v142
    %169 = vmatprep.subr.mxu0 0.0
    %170 = vmatpush1.msra.mxu0 %v143
    %171 = vmatprep.subr.mxu0 0.0
    %172 = vmatpush1.msra.mxu0 %v144
    %173 = vmatprep.subr.mxu0 0.0
    %174 = vmatpush1.msra.mxu0 %v145
    %175 = vmatprep.subr.mxu0 0.0
    %176 = vmatpush1.msra.mxu0 %v146
    %177 = vmatprep.subr.mxu0 0.0
    %178 = vmatpush1.msra.mxu0 %v147
    %179 = vmatprep.subr.mxu0 0.0
    %180 = vmatpush1.msra.mxu0 %v148
    %181 = vmatprep.subr.mxu0 0.0
    %182 = vmatpush1.msra.mxu0 %v149
    %183 = vmatprep.subr.mxu0 0.0
    %184 = vmatpush1.msra.mxu0 %v150
    %185 = vmatprep.subr.mxu0 0.0
    %186 = vmatpush1.msra.mxu0 %v151
    %187 = vmatprep.subr.mxu0 0.0
    %188 = vmatpush1.msra.mxu0 %v152
    %189 = vmatprep.subr.mxu0 0.0
    %190 = vmatpush1.msra.mxu0 %v153
    %191 = vmatprep.subr.mxu0 0.0
    %192 = vmatpush1.msra.mxu0 0.0
    %193 = vmatprep.subr.mxu0 0.0
    %194 = vmatpush1.msra.mxu0 0.0
    %195 = vmatprep.subr.mxu0 0.0
    %196 = vmatpush1.msra.mxu0 0.0
    %197 = vmatprep.subr.mxu0 0.0
    %198 = vmatpush1.msra.mxu0 0.0
    %199 = vmatprep.subr.mxu0 0.0
    %200 = vmatpush1.msra.mxu0 0.0
    %201 = vmatprep.subr.mxu0 0.0
    %202 = vmatpush1.msra.mxu0 0.0
    %203 = vmatprep.subr.mxu0 0.0
    %204 = vmatpush1.msra.mxu0 0.0
    %205 = vmatprep.subr.mxu0 0.0
    %206 = vmatpush1.msra.mxu0 0.0
    %207 = vmatprep.subr.mxu0 0.0
    %208 = vmatpush1.msra.mxu0 0.0
    %209 = vmatprep.subr.mxu0 0.0
    %210 = vmatpush1.msra.mxu0 0.0
    %211 = vmatprep.subr.mxu0 0.0
    %212 = vmatpush1.msra.mxu0 0.0
    %213 = vmatprep.subr.mxu0 0.0
    %214 = vmatpush1.msra.mxu0 0.0
    %215 = vmatprep.subr.mxu0 0.0
    %216 = vmatpush1.msra.mxu0 0.0
    %217 = vmatprep.subr.mxu0 0.0
    %218 = vmatpush1.msra.mxu0 0.0
    %219 = vmatprep.subr.mxu0 0.0
    %220 = vmatpush1.msra.mxu0 0.0
    %221 = vmatprep.subr.mxu0 0.0
    %222 = vmatpush1.msra.mxu0 0.0
    %223 = vmatprep.mubr.f32.mxu0 0.0
    %224 = vmatmul.mubr.f32.gmra.mrb[0].mxu0 %v137
    %v225 = vpop.f32.mrb[0].mxu0
    %v226 = vadd.f32 %v158, %v225
    %v227 = vpop.f32.mrb[0].mxu0
    %228 = vdwg.mxu0
    %v229 = vmax.f32 %v226, 0.0
    %s230 = scalar_lea.vmem [#allocation4], 128
    %v231 = vld [vmem:[%s230] sm:$0xff]
    %v232 = vld [vmem:[%s230 + $0x8] sm:$0xff]
    %v233 = vld [vmem:[%s230 + $0x10] sm:$0xff]
    %v234 = vld [vmem:[%s230 + $0x18] sm:$0xff]
    %v235 = vld [vmem:[%s230 + $0x20] sm:$0xff]
    %v236 = vld [vmem:[%s230 + $0x28] sm:$0xff]
    %v237 = vld [vmem:[%s230 + $0x30] sm:$0xff]
    %v238 = vld [vmem:[%s230 + $0x38] sm:$0xff]
    %v239 = vld [vmem:[%s230 + $0x40] sm:$0xff]
    %v240 = vld [vmem:[%s230 + $0x48] sm:$0xff]
    %v241 = vld [vmem:[%s230 + $0x50] sm:$0xff]
    %v242 = vld [vmem:[%s230 + $0x58] sm:$0xff]
    %v243 = vld [vmem:[%s230 + $0x60] sm:$0xff]
    %v244 = vld [vmem:[%s230 + $0x68] sm:$0xff]
    %v245 = vld [vmem:[%s230 + $0x70] sm:$0xff]
    %v246 = vld [vmem:[%s230 + $0x78] sm:$0xff]
    %v247 = vld [vmem:[%s3 + $0x2] sm:$0x1]
    %v248 = vlaneseq
    %v249 = vshrl.u32 %v248, 7
    %v250 = vsub.s32 0, %v249
    %v251 = vrot.slane %v247, %v250
    %252 = vmatprep.subr.mxu0 0.0
    %253 = vmatpush1.msra.mxu0 %v231
    %254 = vmatprep.subr.mxu0 0.0
    %255 = vmatpush1.msra.mxu0 %v232
    %256 = vmatprep.subr.mxu0 0.0
    %257 = vmatpush1.msra.mxu0 %v233
    %258 = vmatprep.subr.mxu0 0.0
    %259 = vmatpush1.msra.mxu0 %v234
    %260 = vmatprep.subr.mxu0 0.0
    %261 = vmatpush1.msra.mxu0 %v235
    %262 = vmatprep.subr.mxu0 0.0
    %263 = vmatpush1.msra.mxu0 %v236
    %264 = vmatprep.subr.mxu0 0.0
    %265 = vmatpush1.msra.mxu0 %v237
    %266 = vmatprep.subr.mxu0 0.0
    %267 = vmatpush1.msra.mxu0 %v238
    %268 = vmatprep.subr.mxu0 0.0
    %269 = vmatpush1.msra.mxu0 %v239
    %270 = vmatprep.subr.mxu0 0.0
    %271 = vmatpush1.msra.mxu0 %v240
    %272 = vmatprep.subr.mxu0 0.0
    %273 = vmatpush1.msra.mxu0 %v241
    %274 = vmatprep.subr.mxu0 0.0
    %275 = vmatpush1.msra.mxu0 %v242
    %276 = vmatprep.subr.mxu0 0.0
    %277 = vmatpush1.msra.mxu0 %v243
    %278 = vmatprep.subr.mxu0 0.0
    %279 = vmatpush1.msra.mxu0 %v244
    %280 = vmatprep.subr.mxu0 0.0
    %281 = vmatpush1.msra.mxu0 %v245
    %282 = vmatprep.subr.mxu0 0.0
    %283 = vmatpush1.msra.mxu0 %v246
    %284 = vmatprep.subr.mxu0 0.0
    %285 = vmatpush1.msra.mxu0 0.0
    %286 = vmatprep.subr.mxu0 0.0
    %287 = vmatpush1.msra.mxu0 0.0
    %288 = vmatprep.subr.mxu0 0.0
    %289 = vmatpush1.msra.mxu0 0.0
    %290 = vmatprep.subr.mxu0 0.0
    %291 = vmatpush1.msra.mxu0 0.0
    %292 = vmatprep.subr.mxu0 0.0
    %293 = vmatpush1.msra.mxu0 0.0
    %294 = vmatprep.subr.mxu0 0.0
    %295 = vmatpush1.msra.mxu0 0.0
    %296 = vmatprep.subr.mxu0 0.0
    %297 = vmatpush1.msra.mxu0 0.0
    %298 = vmatprep.subr.mxu0 0.0
    %299 = vmatpush1.msra.mxu0 0.0
    %300 = vmatprep.subr.mxu0 0.0
    %301 = vmatpush1.msra.mxu0 0.0
    %302 = vmatprep.subr.mxu0 0.0
    %303 = vmatpush1.msra.mxu0 0.0
    %304 = vmatprep.subr.mxu0 0.0
    %305 = vmatpush1.msra.mxu0 0.0
    %306 = vmatprep.subr.mxu0 0.0
    %307 = vmatpush1.msra.mxu0 0.0
    %308 = vmatprep.subr.mxu0 0.0
    %309 = vmatpush1.msra.mxu0 0.0
    %310 = vmatprep.subr.mxu0 0.0
    %311 = vmatpush1.msra.mxu0 0.0
    %312 = vmatprep.subr.mxu0 0.0
    %313 = vmatpush1.msra.mxu0 0.0
    %314 = vmatprep.subr.mxu0 0.0
    %315 = vmatpush1.msra.mxu0 0.0
    %316 = vmatprep.mubr.f32.mxu0 0.0
    %317 = vmatmul.mubr.f32.gmra.mrb[0].mxu0 %v229
    %v318 = vpop.f32.mrb[0].mxu0
    %v319 = vadd.f32 %v251, %v318
    %v320 = vpop.f32.mrb[0].mxu0
    %321 = vdwg.mxu0
    %v322 = vmax.f32 %v319, 0.0
    %s323 = scalar_lea.vmem [#allocation4], 256
    %v324 = vld [vmem:[%s323] sm:$0xff]
    %v325 = vld [vmem:[%s323 + $0x8] sm:$0xff]
    %v326 = vld [vmem:[%s323 + $0x10] sm:$0xff]
    %v327 = vld [vmem:[%s323 + $0x18] sm:$0xff]
    %v328 = vld [vmem:[%s323 + $0x20] sm:$0xff]
    %v329 = vld [vmem:[%s323 + $0x28] sm:$0xff]
    %v330 = vld [vmem:[%s323 + $0x30] sm:$0xff]
    %v331 = vld [vmem:[%s323 + $0x38] sm:$0xff]
    %v332 = vld [vmem:[%s323 + $0x40] sm:$0xff]
    %v333 = vld [vmem:[%s323 + $0x48] sm:$0xff]
    %v334 = vld [vmem:[%s323 + $0x50] sm:$0xff]
    %v335 = vld [vmem:[%s323 + $0x58] sm:$0xff]
    %v336 = vld [vmem:[%s323 + $0x60] sm:$0xff]
    %v337 = vld [vmem:[%s323 + $0x68] sm:$0xff]
    %v338 = vld [vmem:[%s323 + $0x70] sm:$0xff]
    %v339 = vld [vmem:[%s323 + $0x78] sm:$0xff]
    %v340 = vld [vmem:[%s3 + $0x3] sm:$0x1]
    %v341 = vlaneseq
    %v342 = vshrl.u32 %v341, 7
    %v343 = vsub.s32 0, %v342
    %v344 = vrot.slane %v340, %v343
    %345 = vmatprep.subr.mxu0 0.0
    %346 = vmatpush1.msra.mxu0 %v324
    %347 = vmatprep.subr.mxu0 0.0
    %348 = vmatpush1.msra.mxu0 %v325
    %349 = vmatprep.subr.mxu0 0.0
    %350 = vmatpush1.msra.mxu0 %v326
    %351 = vmatprep.subr.mxu0 0.0
    %352 = vmatpush1.msra.mxu0 %v327
    %353 = vmatprep.subr.mxu0 0.0
    %354 = vmatpush1.msra.mxu0 %v328
    %355 = vmatprep.subr.mxu0 0.0
    %356 = vmatpush1.msra.mxu0 %v329
    %357 = vmatprep.subr.mxu0 0.0
    %358 = vmatpush1.msra.mxu0 %v330
    %359 = vmatprep.subr.mxu0 0.0
    %360 = vmatpush1.msra.mxu0 %v331
    %361 = vmatprep.subr.mxu0 0.0
    %362 = vmatpush1.msra.mxu0 %v332
    %363 = vmatprep.subr.mxu0 0.0
    %364 = vmatpush1.msra.mxu0 %v333
    %365 = vmatprep.subr.mxu0 0.0
    %366 = vmatpush1.msra.mxu0 %v334
    %367 = vmatprep.subr.mxu0 0.0
    %368 = vmatpush1.msra.mxu0 %v335
    %369 = vmatprep.subr.mxu0 0.0
    %370 = vmatpush1.msra.mxu0 %v336
    %371 = vmatprep.subr.mxu0 0.0
    %372 = vmatpush1.msra.mxu0 %v337
    %373 = vmatprep.subr.mxu0 0.0
    %374 = vmatpush1.msra.mxu0 %v338
    %375 = vmatprep.subr.mxu0 0.0
    %376 = vmatpush1.msra.mxu0 %v339
    %377 = vmatprep.subr.mxu0 0.0
    %378 = vmatpush1.msra.mxu0 0.0
    %379 = vmatprep.subr.mxu0 0.0
    %380 = vmatpush1.msra.mxu0 0.0
    %381 = vmatprep.subr.mxu0 0.0
    %382 = vmatpush1.msra.mxu0 0.0
    %383 = vmatprep.subr.mxu0 0.0
    %384 = vmatpush1.msra.mxu0 0.0
    %385 = vmatprep.subr.mxu0 0.0
    %386 = vmatpush1.msra.mxu0 0.0
    %387 = vmatprep.subr.mxu0 0.0
    %388 = vmatpush1.msra.mxu0 0.0
    %389 = vmatprep.subr.mxu0 0.0
    %390 = vmatpush1.msra.mxu0 0.0
    %391 = vmatprep.subr.mxu0 0.0
    %392 = vmatpush1.msra.mxu0 0.0
    %393 = vmatprep.subr.mxu0 0.0
    %394 = vmatpush1.msra.mxu0 0.0
    %395 = vmatprep.subr.mxu0 0.0
    %396 = vmatpush1.msra.mxu0 0.0
    %397 = vmatprep.subr.mxu0 0.0
    %398 = vmatpush1.msra.mxu0 0.0
    %399 = vmatprep.subr.mxu0 0.0
    %400 = vmatpush1.msra.mxu0 0.0
    %401 = vmatprep.subr.mxu0 0.0
    %402 = vmatpush1.msra.mxu0 0.0
    %403 = vmatprep.subr.mxu0 0.0
    %404 = vmatpush1.msra.mxu0 0.0
    %405 = vmatprep.subr.mxu0 0.0
    %406 = vmatpush1.msra.mxu0 0.0
    %407 = vmatprep.subr.mxu0 0.0
    %408 = vmatpush1.msra.mxu0 0.0
    %409 = vmatprep.mubr.f32.mxu0 0.0
    %410 = vmatmul.mubr.f32.gmra.mrb[0].mxu0 %v322
    %v411 = vpop.f32.mrb[0].mxu0
    %v412 = vadd.f32 %v344, %v411
    %v413 = vpop.f32.mrb[0].mxu0
    %414 = vdwg.mxu0
    %v415 = vmax.f32 %v412, 0.0
    %v416 = vld [vmem:[%s3 + $0x4] sm:$0x1]
    %v417 = vld [vmem:[%s3 + $0x5] sm:$0x1]
    %v418 = vlaneseq
    %v419 = vshrl.u32 %v418, 7
    %v420 = vsub.s32 0, %v419
    %v421 = vrot.slane %v416, %v420
    %v422 = vmul.f32 %v415, %v421
    %423 = vadd.xlane.f32.xlu0 %v422
    %v424 = vpop.xlane.xlu0 %423
    %v425 = vlaneseq
    %v426 = vshrl.u32 %v425, 7
    %v427 = vsub.s32 0, %v426
    %v428 = vrot.slane %v417, %v427
    %v429 = vadd.f32 %v424, %v428
    %vm430 = vcmask 7168
    %431 = vst.msk [vmem:[%s4] sm:$0xff] %vm430, %v429
    // Predicated region
    $region26: #{_critic_forward_impl.1} parent=1 // pred_check
      _
    $region27: #{_critic_forward_impl.1} parent=1 // pred_check_branch
      %433 = sbr.rel (0) target = $region29
    $region28: #{_critic_forward_impl.1} parent=1 // pred_region
      _
    $region29: #{_critic_forward_impl.1} parent=1 // pred_fallthru
      _
    // Predicated region
    $region30: #{_critic_forward_impl.1} parent=1 // pred_check
      _
    $region31: #{_critic_forward_impl.1} parent=1 // pred_check_branch
      %435 = sbr.rel (0) target = $region33
    $region32: #{_critic_forward_impl.1} parent=1 // pred_region
      _
    $region33: #{_critic_forward_impl.1} parent=1 // pred_fallthru
      _
    %436 = vsyncpa [#allocation3], 1
    %437 = vsyncpa [#allocation5], 1

</llo_original>
